<compile_context>
chip_gen: v7x
topology: tpu7x:2x2x1
jax: 0.10.0
libtpu: 0.0.40
codegen_flags: <defaults>
</compile_context>

<pallas_src>
import jax
import jax.numpy as jnp
from jax import lax
from jax.experimental import pallas as pl
from jax.experimental.pallas import tpu as pltpu


def mlp_kernel(x_ref, w1_ref, b1_ref, w2_ref, b2_ref, o_ref):
    # x_ref : (TB, IN)   batch-major tile, straight from HBM (no wrapper transpose)
    # w1_ref: (HID, IN)  b1_ref: (HID, 1)
    # w2_ref: (OUT, HID) b2_ref: (OUT, 1)
    # o_ref : (OUT, TB)  lane-dense output tile
    #
    # Contract the feature axis of W1 with the feature axis of x (A @ B^T form,
    # same dimension_numbers the official TPU flash-attention kernel uses), so
    # the result (HID, TB) already has batch on lanes — no HBM-side transpose.
    h = lax.dot_general(
        w1_ref[...], x_ref[...],
        dimension_numbers=(((1,), (1,)), ((), ())),
        preferred_element_type=jnp.float32)                    # (HID, TB)
    h = jnp.maximum(h + b1_ref[...], 0.0)                      # VPU relu+bias
    y = jnp.dot(w2_ref[...], h, preferred_element_type=jnp.float32)  # (OUT, TB)
    o_ref[...] = (y + b2_ref[...]).astype(o_ref.dtype)


def mlp_forward(x, w1, b1, w2, b2, *, tb=8192):
    """x: (B, 10), w1: (25, 10), b1: (25,), w2: (3, 25), b2: (3,) -> (B, 3)."""
    B, in_dim = x.shape
    hid = w1.shape[0]
    out_dim = w2.shape[0]

    if B <= tb:
        # Single block covering the full array: exempt from the (8, 128)
        # divisibility rule, no padding or masking needed.
        TB = B
    else:
        # TB is a multiple of 8 and 128 so interior blocks are legal; the last
        # (ragged) block is padded on read / masked on write by Pallas.  Each
        # batch column is independent, so padding garbage cannot contaminate
        # valid outputs.
        TB = tb

    grid = (pl.cdiv(B, TB),)

    xf = x if x.dtype == jnp.float32 else x.astype(jnp.float32)
    b1c = b1.reshape(hid, 1).astype(jnp.float32)
    b2c = b2.reshape(out_dim, 1).astype(jnp.float32)

    out_t = pl.pallas_call(
        mlp_kernel,
        out_shape=jax.ShapeDtypeStruct((out_dim, B), jnp.float32),
        grid=grid,
        in_specs=[
            pl.BlockSpec((TB, in_dim), lambda i: (i, 0)),    # x batch tile (native layout)
            pl.BlockSpec((hid, in_dim), lambda i: (0, 0)),   # W1 (VMEM-resident)
            pl.BlockSpec((hid, 1), lambda i: (0, 0)),        # b1
            pl.BlockSpec((out_dim, hid), lambda i: (0, 0)),  # W2
            pl.BlockSpec((out_dim, 1), lambda i: (0, 0)),    # b2
        ],
        out_specs=pl.BlockSpec((out_dim, TB), lambda i: (0, i)),
        compiler_params=pltpu.CompilerParams(
            # Batch axis is embarrassingly parallel -> megacore sharding on v7x
            # (2 TCs); no-op on v5e/v6e.
            dimension_semantics=("parallel",),
            # ~11 MiB actually used at TB=8192; 32 MiB keeps headroom and also
            # covers v5e, whose default scoped VMEM is only 16 MiB.
            vmem_limit_bytes=32 * 1024 * 1024),
    )(xf, w1.astype(jnp.float32), b1c, w2.astype(jnp.float32), b2c)

    # Small layout hop to preserve the PyTorch (B, 3) output convention.
    # A consumer that accepts (features, batch) could use out_t directly.
    return out_t.T


def init_params(key):
    # PyTorch nn.Linear default init: U(-1/sqrt(fan_in), 1/sqrt(fan_in)),
    # weights stored in torch (out_features, in_features) convention.
    k1, k2, k3, k4 = jax.random.split(key, 4)
    in1, hid, out = 10, 25, 3
    bound1 = 1.0 / jnp.sqrt(jnp.float32(in1))
    bound2 = 1.0 / jnp.sqrt(jnp.float32(hid))
    w1 = jax.random.uniform(k1, (hid, in1), jnp.float32, -bound1, bound1)
    b1 = jax.random.uniform(k2, (hid,), jnp.float32, -bound1, bound1)
    w2 = jax.random.uniform(k3, (out, hid), jnp.float32, -bound2, bound2)
    b2 = jax.random.uniform(k4, (out,), jnp.float32, -bound2, bound2)
    return w1, b1, w2, b2


if __name__ == "__main__":
    key = jax.random.PRNGKey(0)
    pkey, xkey, xkey2 = jax.random.split(key, 3)
    w1, b1, w2, b2 = init_params(pkey)

    def ref_fwd(x):
        return jnp.maximum(x @ w1.T + b1, 0.0) @ w2.T + b2

    # Small case from the spec (single full-array block, grid=1).
    B = 8
    x = jax.random.normal(xkey, (B, 10), jnp.float32)
    out = jax.block_until_ready(mlp_forward(x, w1, b1, w2, b2))
    assert out.shape == (B, 3)
    assert jnp.allclose(out, ref_fwd(x), atol=1e-5, rtol=1e-5)

    # Non-multiple batch exercising grid=2 with a ragged last block handled by
    # Pallas (padded read / masked write) — no explicit jnp.pad anywhere.
    B2 = 300
    x2 = jax.random.normal(xkey2, (B2, 10), jnp.float32)
    out2 = jax.block_until_ready(mlp_forward(x2, w1, b1, w2, b2, tb=256))
    assert out2.shape == (B2, 3)
    assert jnp.allclose(out2, ref_fwd(x2), atol=1e-5, rtol=1e-5)

    print("KERNEL_OK")
</pallas_src>

<mosaic_0001>
module attributes {stable_mosaic.version = 11 : i64} {
  func.func @mlp_kernel(%arg0: i32, %arg1: memref<8x10xf32, #tpu.memory_space<vmem>>, %arg2: memref<25x10xf32, #tpu.memory_space<vmem>>, %arg3: memref<25x1xf32, #tpu.memory_space<vmem>>, %arg4: memref<3x25xf32, #tpu.memory_space<vmem>>, %arg5: memref<3x1xf32, #tpu.memory_space<vmem>>, %arg6: memref<3x8xf32, #tpu.memory_space<vmem>>) attributes {dimension_semantics = [#tpu.dimension_semantics<parallel>], iteration_bounds = array<i64: 1>, scalar_prefetch = 0 : i64, scratch_operands = 0 : i64, tpu.core_type = #tpu.core_type<tc>, window_params = [{transform_indices = @transform_0, window_bounds = array<i64: 8, 10>}, {pipeline_mode = #tpu.pipeline_mode<synchronous>, transform_indices = @transform_1, window_bounds = array<i64: 25, 10>}, {pipeline_mode = #tpu.pipeline_mode<synchronous>, transform_indices = @transform_2, window_bounds = array<i64: 25, 1>}, {pipeline_mode = #tpu.pipeline_mode<synchronous>, transform_indices = @transform_3, window_bounds = array<i64: 3, 25>}, {pipeline_mode = #tpu.pipeline_mode<synchronous>, transform_indices = @transform_4, window_bounds = array<i64: 3, 1>}, {transform_indices = @transform_5, window_bounds = array<i64: 3, 8>}]} {
    %c0 = arith.constant 0 : index
    %c0_0 = arith.constant 0 : index
    %0 = vector.load %arg2[%c0, %c0_0] : memref<25x10xf32, #tpu.memory_space<vmem>>, vector<25x10xf32>
    %c0_1 = arith.constant 0 : index
    %c0_2 = arith.constant 0 : index
    %1 = vector.load %arg1[%c0_1, %c0_2] : memref<8x10xf32, #tpu.memory_space<vmem>>, vector<8x10xf32>
    %cst = arith.constant dense<0.000000e+00> : vector<25x8xf32>
    %2 = tpu.matmul %0, %1, %cst {dimension_numbers = #tpu.dot_dimension_numbers<[1], [1], [0], [0], [0, 0, 1, 0], [], []>} : vector<25x10xf32>, vector<8x10xf32>, vector<25x8xf32> -> vector<25x8xf32>
    %c0_3 = arith.constant 0 : index
    %c0_4 = arith.constant 0 : index
    %3 = vector.load %arg3[%c0_3, %c0_4] : memref<25x1xf32, #tpu.memory_space<vmem>>, vector<25x1xf32>
    %4 = vector.broadcast %3 : vector<25x1xf32> to vector<25x8xf32>
    %5 = arith.addf %2, %4 : vector<25x8xf32>
    %cst_5 = arith.constant 0.000000e+00 : f32
    %6 = vector.broadcast %cst_5 : f32 to vector<25x8xf32>
    %7 = arith.maximumf %5, %6 : vector<25x8xf32>
    %c0_6 = arith.constant 0 : index
    %c0_7 = arith.constant 0 : index
    %8 = vector.load %arg4[%c0_6, %c0_7] : memref<3x25xf32, #tpu.memory_space<vmem>>, vector<3x25xf32>
    %cst_8 = arith.constant dense<0.000000e+00> : vector<3x8xf32>
    %9 = tpu.matmul %8, %7, %cst_8 {dimension_numbers = #tpu.dot_dimension_numbers<[1], [0], [0], [1], [0, 0, 1, 1], [], []>} : vector<3x25xf32>, vector<25x8xf32>, vector<3x8xf32> -> vector<3x8xf32>
    %c0_9 = arith.constant 0 : index
    %c0_10 = arith.constant 0 : index
    %10 = vector.load %arg5[%c0_9, %c0_10] : memref<3x1xf32, #tpu.memory_space<vmem>>, vector<3x1xf32>
    %11 = vector.broadcast %10 : vector<3x1xf32> to vector<3x8xf32>
    %12 = arith.addf %9, %11 : vector<3x8xf32>
    %c0_11 = arith.constant 0 : index
    %c0_12 = arith.constant 0 : index
    %13 = vector.load %arg6[%c0_11, %c0_12] : memref<3x8xf32, #tpu.memory_space<vmem>>, vector<3x8xf32>
    tpu.vector_store %arg6[%c0_11, %c0_12], %12 {strides = array<i32>} : memref<3x8xf32, #tpu.memory_space<vmem>>, vector<3x8xf32>,
    return
  }
  func.func @transform_0(%arg0: i32) -> (i32, i32) {
    %c0_i32 = arith.constant 0 : i32
    %c0_i32_0 = arith.constant 0 : i32
    return %arg0, %c0_i32 : i32, i32
  }
  func.func @transform_1(%arg0: i32) -> (i32, i32) {
    %c0_i32 = arith.constant 0 : i32
    %c0_i32_0 = arith.constant 0 : i32
    %c0_i32_1 = arith.constant 0 : i32
    return %c0_i32, %c0_i32_0 : i32, i32
  }
  func.func @transform_2(%arg0: i32) -> (i32, i32) {
    %c0_i32 = arith.constant 0 : i32
    %c0_i32_0 = arith.constant 0 : i32
    %c0_i32_1 = arith.constant 0 : i32
    return %c0_i32, %c0_i32_0 : i32, i32
  }
  func.func @transform_3(%arg0: i32) -> (i32, i32) {
    %c0_i32 = arith.constant 0 : i32
    %c0_i32_0 = arith.constant 0 : i32
    %c0_i32_1 = arith.constant 0 : i32
    return %c0_i32, %c0_i32_0 : i32, i32
  }
  func.func @transform_4(%arg0: i32) -> (i32, i32) {
    %c0_i32 = arith.constant 0 : i32
    %c0_i32_0 = arith.constant 0 : i32
    %c0_i32_1 = arith.constant 0 : i32
    return %c0_i32, %c0_i32_0 : i32, i32
  }
  func.func @transform_5(%arg0: i32) -> (i32, i32) {
    %c0_i32 = arith.constant 0 : i32
    %c0_i32_0 = arith.constant 0 : i32
    return %c0_i32, %arg0 : i32, i32
  }
}

</mosaic_0001>

<llo_original>
// kernel: tpu_custom_call.1
$region0: #{tpu_custom_call.1}
  #allocation0 [shape = 'u32[]', space=smem, size = 0x4, offset = 0x4, fixed_abs, tag = 'smem constant byte address 0x4 - core index']
  #allocation1 [shape = 'u32[144,128]{1,0:T(1,128)}', space=vmem, size = 0x12000, scoped, tag = 'internal scratch']
  %s0 = inlined_call_operand.vmem [shape: f32[8,10], index: 0, kind: input, shape index: {}]
  %s1 = inlined_call_operand.vmem [shape: f32[25,10], index: 1, kind: input, shape index: {}]
  %s2 = inlined_call_operand.vmem [shape: f32[25,1], index: 2, kind: input, shape index: {}]
  %s3 = inlined_call_operand.vmem [shape: f32[3,25], index: 3, kind: input, shape index: {}]
  %s4 = inlined_call_operand.vmem [shape: f32[3,1], index: 4, kind: input, shape index: {}]
  %s5 = inlined_call_operand.hbm [shape: f32[3,8], index: 5, kind: output, shape index: {}]
  %s6 = sld [smem:[#allocation0]]
  $region30: #{tpu_custom_call.1} parent=0
    _
  %s8 = ssub.s32 1, %s6
  %s9 = scalar_select 0, %s8, %s6
  $region1: #{tpu_custom_call.1} parent=0
    #allocation2 [shape = 'u8[2048]{0}', space=vmem, size = 0x800, scoped, tag = 'output window, operand 0, single buffered']
    #allocation3 [shape = 's32[1]{0}', space=sflag, size = 0x4, scoped, tag = 'scoped memory for tpu_custom_call.1']
    %10 = vsyncpa [#allocation3], 0
    // Predicated region
    $region2: #{tpu_custom_call.1} parent=1 // pred_check
      _
    $region3: #{tpu_custom_call.1} parent=1 // pred_check_branch
      %12 = sbr.rel (0) target = $region5
    $region4: #{tpu_custom_call.1} parent=1 // pred_region
      _
    $region5: #{tpu_custom_call.1} parent=1 // pred_fallthru
      _
    // Predicated region
    $region6: #{tpu_custom_call.1} parent=1 // pred_check
      _
    $region7: #{tpu_custom_call.1} parent=1 // pred_check_branch
      %14 = sbr.rel (0) target = $region9
    $region8: #{tpu_custom_call.1} parent=1 // pred_region
      _
    $region9: #{tpu_custom_call.1} parent=1 // pred_fallthru
      _
    // Predicated region
    $region10: #{tpu_custom_call.1} parent=1 // pred_check
      _
    $region11: #{tpu_custom_call.1} parent=1 // pred_check_branch
      %16 = sbr.rel (0) target = $region13
    $region12: #{tpu_custom_call.1} parent=1 // pred_region
      _
    $region13: #{tpu_custom_call.1} parent=1 // pred_fallthru
      _
    // Predicated region
    $region14: #{tpu_custom_call.1} parent=1 // pred_check
      _
    $region15: #{tpu_custom_call.1} parent=1 // pred_check_branch
      %18 = sbr.rel (0) target = $region17
    $region16: #{tpu_custom_call.1} parent=1 // pred_region
      _
    $region17: #{tpu_custom_call.1} parent=1 // pred_fallthru
      _
    // Predicated region
    $region18: #{tpu_custom_call.1} parent=1 // pred_check
      _
    $region19: #{tpu_custom_call.1} parent=1 // pred_check_branch
      %20 = sbr.rel (0) target = $region21
    $region20: #{tpu_custom_call.1} parent=1 // pred_region
      _
    $region21: #{tpu_custom_call.1} parent=1 // pred_fallthru
      _
    %v21 = vld [vmem:[%s1] sm:$0xff]
    %v22 = vld [vmem:[%s1 + $0x8] sm:$0xff]
    %v23 = vld [vmem:[%s1 + $0x10] sm:$0xff]
    %v24 = vld [vmem:[%s1 + $0x18] sm:$0x1]
    %v25 = vld [vmem:[%s0] sm:$0xff]
    %v26 = vld [vmem:[%s2] sm:$0xff]
    %v27 = vld [vmem:[%s2 + $0x8] sm:$0xff]
    %v28 = vld [vmem:[%s2 + $0x10] sm:$0xff]
    %v29 = vld [vmem:[%s2 + $0x18] sm:$0x1]
    %31 = vset.pattern.permute.xlu0 0
    %32 = vperm.xlu0 %31, %v26
    %v33 = vpop.permute.xlu0 %32
    %36 = vset.pattern.permute.xlu0 0
    %37 = vperm.xlu0 %36, %v27
    %v38 = vpop.permute.xlu0 %37
    %41 = vset.pattern.permute.xlu0 0
    %42 = vperm.xlu0 %41, %v28
    %v43 = vpop.permute.xlu0 %42
    %46 = vset.pattern.permute.xlu0 0
    %47 = vperm.xlu0 %46, %v29
    %v48 = vpop.permute.xlu0 %47
    %vm50 = vcmask 80896
    %v52 = vsel %vm50, %v21, 0
    %v55 = vsel %vm50, %v22, 0
    %v58 = vsel %vm50, %v23, 0
    %v61 = vsel %vm50, %v24, 0
    %v64 = vsel %vm50, %v25, 0
    %66 = vmatprep.subr.mxu0 0.0
    %67 = vmatpush1.xpose.msra.mxu0 %v64
    %68 = vmatprep.subr.mxu0 0.0
    %69 = vmatpush1.xpose.msra.mxu0 0.0
    %70 = vmatprep.subr.mxu0 0.0
    %71 = vmatpush1.xpose.msra.mxu0 0.0
    %72 = vmatprep.subr.mxu0 0.0
    %73 = vmatpush1.xpose.msra.mxu0 0.0
    %74 = vmatprep.subr.mxu0 0.0
    %75 = vmatpush1.xpose.msra.mxu0 0.0
    %76 = vmatprep.subr.mxu0 0.0
    %77 = vmatpush1.xpose.msra.mxu0 0.0
    %78 = vmatprep.subr.mxu0 0.0
    %79 = vmatpush1.xpose.msra.mxu0 0.0
    %80 = vmatprep.subr.mxu0 0.0
    %81 = vmatpush1.xpose.msra.mxu0 0.0
    %82 = vmatprep.subr.mxu0 0.0
    %83 = vmatpush1.xpose.msra.mxu0 0.0
    %84 = vmatprep.subr.mxu0 0.0
    %85 = vmatpush1.xpose.msra.mxu0 0.0
    %86 = vmatprep.subr.mxu0 0.0
    %87 = vmatpush1.xpose.msra.mxu0 0.0
    %88 = vmatprep.subr.mxu0 0.0
    %89 = vmatpush1.xpose.msra.mxu0 0.0
    %90 = vmatprep.subr.mxu0 0.0
    %91 = vmatpush1.xpose.msra.mxu0 0.0
    %92 = vmatprep.subr.mxu0 0.0
    %93 = vmatpush1.xpose.msra.mxu0 0.0
    %94 = vmatprep.subr.mxu0 0.0
    %95 = vmatpush1.xpose.msra.mxu0 0.0
    %96 = vmatprep.subr.mxu0 0.0
    %97 = vmatpush1.xpose.msra.mxu0 0.0
    %98 = vmatprep.subr.mxu0 0.0
    %99 = vmatpush1.xpose.msra.mxu0 0.0
    %100 = vmatprep.subr.mxu0 0.0
    %101 = vmatpush1.xpose.msra.mxu0 0.0
    %102 = vmatprep.subr.mxu0 0.0
    %103 = vmatpush1.xpose.msra.mxu0 0.0
    %104 = vmatprep.subr.mxu0 0.0
    %105 = vmatpush1.xpose.msra.mxu0 0.0
    %106 = vmatprep.subr.mxu0 0.0
    %107 = vmatpush1.xpose.msra.mxu0 0.0
    %108 = vmatprep.subr.mxu0 0.0
    %109 = vmatpush1.xpose.msra.mxu0 0.0
    %110 = vmatprep.subr.mxu0 0.0
    %111 = vmatpush1.xpose.msra.mxu0 0.0
    %112 = vmatprep.subr.mxu0 0.0
    %113 = vmatpush1.xpose.msra.mxu0 0.0
    %114 = vmatprep.subr.mxu0 0.0
    %115 = vmatpush1.xpose.msra.mxu0 0.0
    %116 = vmatprep.subr.mxu0 0.0
    %117 = vmatpush1.xpose.msra.mxu0 0.0
    %118 = vmatprep.subr.mxu0 0.0
    %119 = vmatpush1.xpose.msra.mxu0 0.0
    %120 = vmatprep.subr.mxu0 0.0
    %121 = vmatpush1.xpose.msra.mxu0 0.0
    %122 = vmatprep.subr.mxu0 0.0
    %123 = vmatpush1.xpose.msra.mxu0 0.0
    %124 = vmatprep.subr.mxu0 0.0
    %125 = vmatpush1.xpose.msra.mxu0 0.0
    %126 = vmatprep.subr.mxu0 0.0
    %127 = vmatpush1.xpose.msra.mxu0 0.0
    %128 = vmatprep.subr.mxu0 0.0
    %129 = vmatpush1.xpose.msra.mxu0 0.0
    %130 = vmatprep.mubr.f32.mxu0 0.0
    %131 = vmatmul.mubr.f32.gmra.mrb[0].mxu0 %v52
    %v132 = vpop.f32.mrb[0].mxu0
    %v133 = vadd.f32 %v33, %v132
    %v134 = vpop.f32.mrb[0].mxu0
    %135 = vmatprep.mubr.f32.mxu0 0.0
    %136 = vmatmul.mubr.f32.gmra.mrb[0].mxu0 %v55
    %v137 = vpop.f32.mrb[0].mxu0
    %v138 = vadd.f32 %v38, %v137
    %v139 = vpop.f32.mrb[0].mxu0
    %140 = vmatprep.mubr.f32.mxu0 0.0
    %141 = vmatmul.mubr.f32.gmra.mrb[0].mxu0 %v58
    %v142 = vpop.f32.mrb[0].mxu0
    %v143 = vadd.f32 %v43, %v142
    %v144 = vpop.f32.mrb[0].mxu0
    %145 = vmatprep.mubr.f32.mxu0 0.0
    %146 = vmatmul.mubr.f32.gmra.mrb[0].mxu0 %v61
    %v147 = vpop.f32.mrb[0].mxu0
    %v148 = vadd.f32 %v48, %v147
    %v149 = vpop.f32.mrb[0].mxu0
    %150 = vdwg.mxu0
    %v151 = vmax.f32 %v133, 0.0
    %v152 = vmax.f32 %v138, 0.0
    %v153 = vmax.f32 %v143, 0.0
    %v154 = vmax.f32 %v148, 0.0
    %v155 = vld [vmem:[%s3] sm:$0x7]
    %v156 = vld [vmem:[%s4] sm:$0x7]
    %158 = vset.pattern.permute.xlu0 0
    %159 = vperm.xlu0 %158, %v156
    %v160 = vpop.permute.xlu0 %159
    %vm162 = vcmask 203776
    %v164 = vsel %vm162, %v155, 0
    %vm166 = vcmask 1040384
    %v168 = vsel %vm166, %v154, 0
    %170 = vmatprep.subr.mxu0 0.0
    %171 = vmatpush1.msra.mxu0 %v151
    %172 = vmatprep.subr.mxu0 0.0
    %173 = vmatpush1.msra.mxu0 %v152
    %174 = vmatprep.subr.mxu0 0.0
    %175 = vmatpush1.msra.mxu0 %v153
    %176 = vmatprep.subr.mxu0 0.0
    %177 = vmatpush1.msra.mxu0 %v168
    %178 = vmatprep.subr.mxu0 0.0
    %179 = vmatpush1.msra.mxu0 0.0
    %180 = vmatprep.subr.mxu0 0.0
    %181 = vmatpush1.msra.mxu0 0.0
    %182 = vmatprep.subr.mxu0 0.0
    %183 = vmatpush1.msra.mxu0 0.0
    %184 = vmatprep.subr.mxu0 0.0
    %185 = vmatpush1.msra.mxu0 0.0
    %186 = vmatprep.subr.mxu0 0.0
    %187 = vmatpush1.msra.mxu0 0.0
    %188 = vmatprep.subr.mxu0 0.0
    %189 = vmatpush1.msra.mxu0 0.0
    %190 = vmatprep.subr.mxu0 0.0
    %191 = vmatpush1.msra.mxu0 0.0
    %192 = vmatprep.subr.mxu0 0.0
    %193 = vmatpush1.msra.mxu0 0.0
    %194 = vmatprep.subr.mxu0 0.0
    %195 = vmatpush1.msra.mxu0 0.0
    %196 = vmatprep.subr.mxu0 0.0
    %197 = vmatpush1.msra.mxu0 0.0
    %198 = vmatprep.subr.mxu0 0.0
    %199 = vmatpush1.msra.mxu0 0.0
    %200 = vmatprep.subr.mxu0 0.0
    %201 = vmatpush1.msra.mxu0 0.0
    %202 = vmatprep.subr.mxu0 0.0
    %203 = vmatpush1.msra.mxu0 0.0
    %204 = vmatprep.subr.mxu0 0.0
    %205 = vmatpush1.msra.mxu0 0.0
    %206 = vmatprep.subr.mxu0 0.0
    %207 = vmatpush1.msra.mxu0 0.0
    %208 = vmatprep.subr.mxu0 0.0
    %209 = vmatpush1.msra.mxu0 0.0
    %210 = vmatprep.subr.mxu0 0.0
    %211 = vmatpush1.msra.mxu0 0.0
    %212 = vmatprep.subr.mxu0 0.0
    %213 = vmatpush1.msra.mxu0 0.0
    %214 = vmatprep.subr.mxu0 0.0
    %215 = vmatpush1.msra.mxu0 0.0
    %216 = vmatprep.subr.mxu0 0.0
    %217 = vmatpush1.msra.mxu0 0.0
    %218 = vmatprep.subr.mxu0 0.0
    %219 = vmatpush1.msra.mxu0 0.0
    %220 = vmatprep.subr.mxu0 0.0
    %221 = vmatpush1.msra.mxu0 0.0
    %222 = vmatprep.subr.mxu0 0.0
    %223 = vmatpush1.msra.mxu0 0.0
    %224 = vmatprep.subr.mxu0 0.0
    %225 = vmatpush1.msra.mxu0 0.0
    %226 = vmatprep.subr.mxu0 0.0
    %227 = vmatpush1.msra.mxu0 0.0
    %228 = vmatprep.subr.mxu0 0.0
    %229 = vmatpush1.msra.mxu0 0.0
    %230 = vmatprep.subr.mxu0 0.0
    %231 = vmatpush1.msra.mxu0 0.0
    %232 = vmatprep.subr.mxu0 0.0
    %233 = vmatpush1.msra.mxu0 0.0
    %234 = vmatprep.mubr.f32.mxu0 0.0
    %235 = vmatmul.mubr.f32.gmra.mrb[0].mxu0 %v164
    %v236 = vpop.f32.mrb[0].mxu0
    %v237 = vadd.f32 %v160, %v236
    %v238 = vpop.f32.mrb[0].mxu0
    %239 = vdwg.mxu0
    %vm240 = vcmask 59392
    %241 = vst.msk [vmem:[#allocation2] sm:$0x7] %vm240, %v237
    // Predicated region
    $region22: #{tpu_custom_call.1} parent=1 // pred_check
      _
    $region23: #{tpu_custom_call.1} parent=1 // pred_check_branch
      %243 = sbr.rel (0) target = $region25
    $region24: #{tpu_custom_call.1} parent=1 // pred_region
      %s245 = ssub.s32 64, 64
      %246 = vsyncadd [#allocation3], %s245
      %s248 = sshll.u32 [#allocation2], 4
      %s249 = int_to_ptr.vmem [resolvable:$true] %s248
      %251 = dma.vmem_to_hbm [thread:$0]  %s249, 64, %s5, [#allocation3]
    $region25: #{tpu_custom_call.1} parent=1 // pred_fallthru
      _
    // Predicated region
    $region26: #{tpu_custom_call.1} parent=1 // pred_check
      _
    $region27: #{tpu_custom_call.1} parent=1 // pred_check_branch
      %253 = sbr.rel (0) target = $region29
    $region28: #{tpu_custom_call.1} parent=1 // pred_region
      %254 = dma.done [#allocation3], 64
    $region29: #{tpu_custom_call.1} parent=1 // pred_fallthru
      _
    %255 = vsyncpa [#allocation3], 1

</llo_original>
